<compile_context>
chip_gen: v6e
topology: v6e:2x2x1
jax: 0.10.0
libtpu: 0.0.40
codegen_flags: <defaults>
</compile_context>

<pallas_src>
import functools

import jax
import jax.numpy as jnp
from jax import lax
from jax.experimental import pallas as pl
from jax.experimental.pallas import tpu as pltpu


_LANES = 128            # lane width of the flattened view (one vreg row)
_MAX_BLOCK_ROWS = 4096  # 4096 x 128 x 4 B = 2 MiB f32 per block


def _round_up(n, m):
    return ((n + m - 1) // m) * m


def _order1_df_kernel(x_ref, halo_ref, keep_ref, o_ref, *, shift):
    """One (TR, 128) tile of the flattened signal.

    Flat semantics: o[i] = x[i] - x[i - shift], where x[i - shift] := 0 for the
    first `shift` elements of every signal.  `keep` encodes, per 128-wide row,
    whether this row starts a new signal (0.0) or not (1.0).
    """
    x = x_ref[...].astype(jnp.float32)                        # (TR, 128)

    # Same-row part of the shift: s[r, l] = x[r, (l - shift) mod 128]
    # (correct predecessor for lanes l >= shift).              [XLU, free slot]
    s = pltpu.roll(x, shift=shift, axis=1)

    # Cross-row part: p[r, l] = x[r-1, 128 + l - shift] for l < shift.
    p = pltpu.roll(s, shift=1, axis=0)

    # Row 0 of the block has no in-block predecessor: splice in the halo row
    # (the last row before this block).  For block 0 the halo index is clamped
    # to 0 (stale/garbage data), but block 0's first row always starts a signal
    # so the NaN-safe keep-select below forces its predecessor to exactly 0.
    halo = halo_ref[halo_ref.shape[0] - 1:, :].astype(jnp.float32)   # (1, 128)
    halo = pltpu.roll(halo, shift=shift, axis=1)
    row = lax.broadcasted_iota(jnp.int32, x.shape, 0)
    p = jnp.where(row == 0, halo, p)

    # Zero the predecessor on signal-start rows (t == 0 -> x[-1] = 0).
    # `where` (not multiply) so garbage/NaN from clipped blocks cannot leak.
    p = jnp.where(keep_ref[...] > 0.0, p, 0.0)                # (TR,1) broadcast

    lane = lax.broadcasted_iota(jnp.int32, x.shape, 1)
    x_prev = jnp.where(lane < shift, p, s)

    # Order-1 difference filter with fixed taps w1 = +1, w0 = -1.
    o_ref[...] = (x - x_prev).astype(o_ref.dtype)


def _df_flat(x2d, keep, shift):
    """Run the flat kernel.  x2d: (N, 128); keep: (N, 1) f32; shift <= 128."""
    n_rows = x2d.shape[0]

    # Row tile: multiple of 8, <= 2 MiB per f32 block, and at most ~N/2 so any
    # problem with more than 8 rows yields >= 2 grid steps (v7x megacore).
    tr = min(_MAX_BLOCK_ROWS, _round_up(pl.cdiv(n_rows, 2), 8))
    halo_rows = 8
    ratio = tr // halo_rows
    grid = (pl.cdiv(n_rows, tr),)

    return pl.pallas_call(
        functools.partial(_order1_df_kernel, shift=shift),
        out_shape=jax.ShapeDtypeStruct((n_rows, _LANES), x2d.dtype),
        grid_spec=pltpu.PrefetchScalarGridSpec(
            num_scalar_prefetch=0,
            grid=grid,
            in_specs=[
                # Main data block.
                pl.BlockSpec((tr, _LANES), lambda b: (b, 0)),
                # 8-row halo ending at the row just above this block
                # (clamped to block 0 when b == 0; see kernel comment).
                pl.BlockSpec((halo_rows, _LANES),
                             lambda b: (jnp.maximum(b * ratio - 1, 0), 0)),
                # Per-row signal-start mask (0.0 at signal starts, else 1.0).
                pl.BlockSpec((tr, 1), lambda b: (b, 0)),
            ],
            out_specs=pl.BlockSpec((tr, _LANES), lambda b: (b, 0)),
        ),
        compiler_params=pltpu.CompilerParams(
            # Halo read instead of a carry scratch -> no serial dependence, so
            # the single grid axis can be split across TensorCores.
            dimension_semantics=("parallel",),
            # ~12 MiB double-buffered footprint at TR=4096; v5e's default
            # scoped-VMEM limit is 16 MiB, so raise the cap explicitly.
            vmem_limit_bytes=32 * 1024 * 1024,
        ),
    )(x2d, x2d, keep)


def _keep_mask(n_rows, rows_per_signal):
    r = jnp.arange(n_rows, dtype=jnp.int32)
    return jnp.where(r % rows_per_signal == 0,
                     jnp.float32(0.0), jnp.float32(1.0)).reshape(n_rows, 1)


def order1_df_filter(x):
    """First-order difference filter: y[b,t,c] = x[b,t,c] - x[b,t-1,c],
    with x[b,-1,c] = 0.  x: (B, L, C)."""
    b, l, c = x.shape

    if c <= _LANES and (l * c) % _LANES == 0:
        # Fast path: native contiguous layout, free reshape to (N, 128).
        n_rows = (b * l * c) // _LANES
        x2d = x.reshape(n_rows, _LANES)
        keep = _keep_mask(n_rows, (l * c) // _LANES)
        y2d = _df_flat(x2d, keep, shift=c)
        return y2d.reshape(b, l, c)

    # Fallback (C > 128 or L*C not a multiple of 128): one lane-padded row per
    # (batch, channel) time series, same kernel with shift = 1.  Pays for a
    # transpose + pad, but is only taken for layouts the flat path can't express.
    r = b * c
    lp = _round_up(max(l, 1), _LANES)
    xt = jnp.transpose(x, (0, 2, 1)).reshape(r, l)
    xt = jnp.pad(xt, ((0, 0), (0, lp - l)))
    n_rows = (r * lp) // _LANES
    x2d = xt.reshape(n_rows, _LANES)
    keep = _keep_mask(n_rows, lp // _LANES)
    y2d = _df_flat(x2d, keep, shift=1)
    yt = y2d.reshape(r, lp)[:, :l]
    return yt.reshape(b, c, l).transpose(0, 2, 1)


if __name__ == "__main__":
    key = jax.random.PRNGKey(0)
    k1, k2 = jax.random.split(key)

    # Shapes implied by SignalProcessingBase.test_forward:
    # (2, in_dim, in_channels) with in_dim = 16, in_channels = scale = 8.
    B, L, C = 2, 16, 8
    x = jax.random.normal(k1, (B, L, C), dtype=jnp.float32)
    y = jax.block_until_ready(order1_df_filter(x))

    x_prev = jnp.concatenate([jnp.zeros((B, 1, C), x.dtype), x[:, :-1, :]], axis=1)
    y_ref = x - x_prev
    assert y.shape == (B, L, C), y.shape
    assert jnp.allclose(y, y_ref, atol=1e-6), float(jnp.max(jnp.abs(y - y_ref)))

    # Also exercise the fallback path (L*C not a multiple of 128).
    B2, L2, C2 = 2, 12, 5
    x2 = jax.random.normal(k2, (B2, L2, C2), dtype=jnp.float32)
    y2 = jax.block_until_ready(order1_df_filter(x2))
    x2_prev = jnp.concatenate([jnp.zeros((B2, 1, C2), x2.dtype), x2[:, :-1, :]],
                              axis=1)
    assert jnp.allclose(y2, x2 - x2_prev, atol=1e-6)

    print("KERNEL_OK")
</pallas_src>

<mosaic_0001>
module attributes {stable_mosaic.version = 11 : i64} {
  func.func @_order1_df_kernel(%arg0: i32, %arg1: memref<8x128xf32, #tpu.memory_space<vmem>>, %arg2: memref<8x128xf32, #tpu.memory_space<vmem>>, %arg3: memref<8x1xf32, #tpu.memory_space<vmem>>, %arg4: memref<8x128xf32, #tpu.memory_space<vmem>>) attributes {dimension_semantics = [#tpu.dimension_semantics<parallel>], iteration_bounds = array<i64: 1>, scalar_prefetch = 0 : i64, scratch_operands = 0 : i64, tpu.core_type = #tpu.core_type<tc>, window_params = [{transform_indices = @transform_0, window_bounds = array<i64: 8, 128>}, {transform_indices = @transform_1, window_bounds = array<i64: 8, 128>}, {transform_indices = @transform_2, window_bounds = array<i64: 8, 1>}, {transform_indices = @transform_3, window_bounds = array<i64: 8, 128>}]} {
    %c0 = arith.constant 0 : index
    %c0_0 = arith.constant 0 : index
    %0 = vector.load %arg1[%c0, %c0_0] : memref<8x128xf32, #tpu.memory_space<vmem>>, vector<8x128xf32>
    %c8_i32 = arith.constant 8 : i32
    %1 = tpu.dynamic_rotate %0 by %c8_i32 dim 1 : vector<8x128xf32>, i32 -> vector<8x128xf32>
    %c1_i32 = arith.constant 1 : i32
    %2 = tpu.dynamic_rotate %1 by %c1_i32 dim 0 : vector<8x128xf32>, i32 -> vector<8x128xf32>
    %c7 = arith.constant 7 : index
    %c0_1 = arith.constant 0 : index
    %3 = vector.load %arg2[%c7, %c0_1] : memref<8x128xf32, #tpu.memory_space<vmem>>, vector<1x128xf32>
    %c8_i32_2 = arith.constant 8 : i32
    %4 = tpu.dynamic_rotate %3 by %c8_i32_2 dim 1 : vector<1x128xf32>, i32 -> vector<1x128xf32>
    %5 = tpu.iota {dimensions = array<i32: 0>} : vector<8x128xi32>
    %c0_i32 = arith.constant 0 : i32
    %6 = vector.broadcast %c0_i32 : i32 to vector<8x128xi32>
    %7 = arith.cmpi eq, %5, %6 : vector<8x128xi32>
    %8 = vector.shape_cast %4 : vector<1x128xf32> to vector<1x128xf32>
    %9 = vector.broadcast %8 : vector<1x128xf32> to vector<8x128xf32>
    %10 = arith.select %7, %9, %2 : vector<8x128xi1>, vector<8x128xf32>
    %c0_3 = arith.constant 0 : index
    %c0_4 = arith.constant 0 : index
    %11 = vector.load %arg3[%c0_3, %c0_4] : memref<8x1xf32, #tpu.memory_space<vmem>>, vector<8x1xf32>
    %cst = arith.constant 0.000000e+00 : f32
    %12 = vector.broadcast %cst : f32 to vector<8x1xf32>
    %13 = arith.cmpf ogt, %11, %12 : vector<8x1xf32>
    %cst_5 = arith.constant 0.000000e+00 : f32
    %14 = vector.shape_cast %13 : vector<8x1xi1> to vector<8x1xi1>
    %15 = vector.broadcast %14 : vector<8x1xi1> to vector<8x128xi1>
    %16 = vector.broadcast %cst_5 : f32 to vector<8x128xf32>
    %17 = arith.select %15, %10, %16 : vector<8x128xi1>, vector<8x128xf32>
    %18 = tpu.iota {dimensions = array<i32: 1>} : vector<8x128xi32>
    %c8_i32_6 = arith.constant 8 : i32
    %19 = vector.broadcast %c8_i32_6 : i32 to vector<8x128xi32>
    %20 = arith.cmpi slt, %18, %19 : vector<8x128xi32>
    %21 = arith.select %20, %17, %1 : vector<8x128xi1>, vector<8x128xf32>
    %22 = arith.subf %0, %21 : vector<8x128xf32>
    %c0_7 = arith.constant 0 : index
    %c0_8 = arith.constant 0 : index
    %23 = vector.load %arg4[%c0_7, %c0_8] : memref<8x128xf32, #tpu.memory_space<vmem>>, vector<8x128xf32>
    tpu.vector_store %arg4[%c0_7, %c0_8], %22 {strides = array<i32>} : memref<8x128xf32, #tpu.memory_space<vmem>>, vector<8x128xf32>,
    return
  }
  func.func @transform_0(%arg0: i32) -> (i32, i32) {
    %c0_i32 = arith.constant 0 : i32
    %c0_i32_0 = arith.constant 0 : i32
    return %arg0, %c0_i32 : i32, i32
  }
  func.func @transform_1(%arg0: i32) -> (i32, i32) {
    %c1_i32 = arith.constant 1 : i32
    %0 = arith.muli %arg0, %c1_i32 : i32
    %c1_i32_0 = arith.constant 1 : i32
    %1 = arith.subi %0, %c1_i32_0 : i32
    %c0_i32 = arith.constant 0 : i32
    %2 = arith.maxsi %1, %c0_i32 : i32
    %c0_i32_1 = arith.constant 0 : i32
    %c0_i32_2 = arith.constant 0 : i32
    return %2, %c0_i32_1 : i32, i32
  }
  func.func @transform_2(%arg0: i32) -> (i32, i32) {
    %c0_i32 = arith.constant 0 : i32
    %c0_i32_0 = arith.constant 0 : i32
    return %arg0, %c0_i32 : i32, i32
  }
  func.func @transform_3(%arg0: i32) -> (i32, i32) {
    %c0_i32 = arith.constant 0 : i32
    %c0_i32_0 = arith.constant 0 : i32
    return %arg0, %c0_i32 : i32, i32
  }
}

</mosaic_0001>

<llo_original>
// kernel: tpu_custom_call.1
$region0: #{tpu_custom_call.1}
  #allocation0 [shape = 'u32[]', space=smem, size = 0x4, offset = 0x4, fixed_abs, tag = 'smem constant byte address 0x4 - core index']
  #allocation1 [shape = 'u32[144,128]{1,0:T(1,128)}', space=vmem, size = 0x12000, scoped, tag = 'internal scratch']
  %s0 = inlined_call_operand.vmem [shape: f32[2,128], index: 0, kind: input, shape index: {}]
  %s1 = inlined_call_operand.vmem [shape: f32[2,128], index: 1, kind: input, shape index: {}]
  %s2 = inlined_call_operand.vmem [shape: f32[2,1], index: 2, kind: input, shape index: {}]
  %s3 = inlined_call_operand.hbm [shape: f32[2,128], index: 3, kind: output, shape index: {}]
  %s4 = sld [smem:[#allocation0]]
  $region22: #{tpu_custom_call.1} parent=0
    _
  %s6 = ssub.s32 1, %s4
  %s7 = scalar_select 0, %s6, %s4
  $region1: #{tpu_custom_call.1} parent=0
    #allocation2 [shape = 'u8[4096]{0}', space=vmem, size = 0x1000, scoped, tag = 'output window, operand 0, single buffered']
    #allocation3 [shape = 's32[1]{0}', space=sflag, size = 0x4, scoped, tag = 'scoped memory for tpu_custom_call.1']
    %8 = vsyncpa [#allocation3], 0
    // Predicated region
    $region2: #{tpu_custom_call.1} parent=1 // pred_check
      _
    $region3: #{tpu_custom_call.1} parent=1 // pred_check_branch
      %10 = sbr.rel (0) target = $region5
    $region4: #{tpu_custom_call.1} parent=1 // pred_region
      _
    $region5: #{tpu_custom_call.1} parent=1 // pred_fallthru
      _
    // Predicated region
    $region6: #{tpu_custom_call.1} parent=1 // pred_check
      _
    $region7: #{tpu_custom_call.1} parent=1 // pred_check_branch
      %12 = sbr.rel (0) target = $region9
    $region8: #{tpu_custom_call.1} parent=1 // pred_region
      %s13 = ssub.s32 0, 1
      %p14 = scmp.gt.s32.totalorder %s13, 0
      %s15 = scalar_select %p14, %s13, 0
      %s16 = smul.u32 4, %s15
      %s17 = ssub.s32 1, %s16
      %s18 = smul.u32 32, %s17
      %p19 = scmp.lt.s32.totalorder %s16, 0
      %s20 = scalar_select %p19, %s16, 0
      %s21 = smul.addr %s20, 2
      %s22 = scalar_lea.vmem %s1, %s21
      %s23 = ssub.s32 0, 1
      %p24 = scmp.gt.s32.totalorder %s23, 0
      %s25 = scalar_select %p24, %s23, 0
      %s26 = smul.u32 4, %s25
      %s27 = ssub.s32 1, %s26
      %s28 = smul.u32 32, %s27
    $region9: #{tpu_custom_call.1} parent=1 // pred_fallthru
      _
    // Predicated region
    $region10: #{tpu_custom_call.1} parent=1 // pred_check
      _
    $region11: #{tpu_custom_call.1} parent=1 // pred_check_branch
      %30 = sbr.rel (0) target = $region13
    $region12: #{tpu_custom_call.1} parent=1 // pred_region
      _
    $region13: #{tpu_custom_call.1} parent=1 // pred_fallthru
      _
    %s31 = ssub.s32 0, 1
    %p32 = scmp.gt.s32.totalorder %s31, 0
    %s33 = scalar_select %p32, %s31, 0
    %s34 = smul.u32 4, %s33
    %s35 = ssub.s32 1, %s34
    %s36 = smul.u32 32, %s35
    %p37 = scmp.lt.s32.totalorder %s34, 0
    %s38 = scalar_select %p37, %s34, 0
    %s39 = smul.addr %s38, 2
    %s40 = scalar_lea.vmem %s1, %s39
    %s41 = ssub.s32 0, 1
    %p42 = scmp.gt.s32.totalorder %s41, 0
    %s43 = scalar_select %p42, %s41, 0
    %s44 = smul.u32 4, %s43
    %s45 = ssub.s32 1, %s44
    %s46 = smul.u32 32, %s45
    %p47 = scmp.lt.s32.totalorder %s44, 0
    %s48 = scalar_select %p47, %s44, 0
    %s49 = smul.addr %s48, 2
    %s50 = scalar_lea.vmem %s1, %s49
    %s51 = ssub.s32 0, 1
    %p52 = scmp.gt.s32.totalorder %s51, 0
    %s53 = scalar_select %p52, %s51, 0
    %s54 = smul.u32 4, %s53
    %s55 = ssub.s32 1, %s54
    %s56 = smul.u32 32, %s55
    %v57 = vld [vmem:[%s0] sm:$0xff]
    %58 = vrot.lane.b32.xlu0 %v57, 8
    %v59 = vpop.permute.xlu0 %58
    %v60 = vrot.slane %v59, 7
    %v61 = vld [vmem:[%s50 + $0x7] sm:$0x1]
    %62 = vrot.lane.b32.xlu0 %v61, 8
    %v63 = vpop.permute.xlu0 %62
    %v64 = vlaneseq
    %v65 = vshrl.u32 %v64, 7
    %vm66 = vcmp.eq.s32.totalorder %v65, 0
    %v67 = vlaneseq
    %v68 = vshrl.u32 %v67, 7
    %v69 = vsub.s32 0, %v68
    %v70 = vrot.slane %v63, %v69
    %v71 = vsel %vm66, %v70, %v60
    %v72 = vld [vmem:[%s2] sm:$0xff]
    %vm73 = vcmp.gt.f32.partialorder %v72, 0.0
    %v74 = vsel %vm73, 1, 0
    %75 = vset.pattern.permute.xlu0 0
    %76 = vperm.xlu0 %75, %v74
    %v77 = vpop.permute.xlu0 %76
    %vm78 = vcmp.eq.s32.totalorder %v77, 1
    %v79 = vsel %vm78, %v71, 0.0
    %v80 = vlaneseq
    %v81 = vand.u32 %v80, 127
    %vm82 = vcmp.lt.s32.totalorder %v81, 8
    %v83 = vsel %vm82, %v79, %v59
    %v84 = vsub.f32 %v57, %v83
    %85 = vst [vmem:[#allocation2] sm:$0xff] %v84
    // Predicated region
    $region14: #{tpu_custom_call.1} parent=1 // pred_check
      _
    $region15: #{tpu_custom_call.1} parent=1 // pred_check_branch
      %87 = sbr.rel (0) target = $region17
    $region16: #{tpu_custom_call.1} parent=1 // pred_region
      %s89 = ssub.s32 128, 32
      %90 = vsyncadd [#allocation3], %s89
      %s91 = sshll.u32 [#allocation2], 4
      %s92 = int_to_ptr.vmem [resolvable:$true] %s91
      %97 = dma.vmem_to_hbm [thread:$0]  %s92, 32, %s3, [#allocation3], 32, 32, 2
    $region17: #{tpu_custom_call.1} parent=1 // pred_fallthru
      _
    // Predicated region
    $region18: #{tpu_custom_call.1} parent=1 // pred_check
      _
    $region19: #{tpu_custom_call.1} parent=1 // pred_check_branch
      %99 = sbr.rel (0) target = $region21
    $region20: #{tpu_custom_call.1} parent=1 // pred_region
      %100 = dma.done [#allocation3], 128
    $region21: #{tpu_custom_call.1} parent=1 // pred_fallthru
      _
    %101 = vsyncpa [#allocation3], 1

</llo_original>
